<compile_context>
chip_gen: v7x
topology: tpu7x:2x2x1
jax: 0.10.0
libtpu: 0.0.40
codegen_flags: <defaults>
</compile_context>

<pallas_src>
import math
import functools

import jax
import jax.numpy as jnp
from jax import lax
from jax.experimental import pallas as pl
from jax.experimental.pallas import tpu as pltpu


# ---------------------------------------------------------------------------
# Deterministic parameter init: gaussian orthogonal random projection matrix
# (mirrors gaussian_orthogonal_random_matrix in the PyTorch module).
# ---------------------------------------------------------------------------
def _orthogonal_chunk(key, cols):
    block = jax.random.normal(key, (cols, cols), dtype=jnp.float32)
    q, _ = jnp.linalg.qr(block)
    return q.T


def gaussian_orthogonal_random_matrix(key, nb_rows, nb_columns, scaling=0):
    nb_full_blocks = nb_rows // nb_columns
    keys = jax.random.split(key, nb_full_blocks + 2)
    blocks = []
    for i in range(nb_full_blocks):
        blocks.append(_orthogonal_chunk(keys[i], nb_columns))
    rem = nb_rows - nb_full_blocks * nb_columns
    if rem > 0:
        q = _orthogonal_chunk(keys[nb_full_blocks], nb_columns)
        blocks.append(q[:rem])
    final = jnp.concatenate(blocks, axis=0)
    if scaling == 0:
        multiplier = jnp.linalg.norm(
            jax.random.normal(keys[-1], (nb_rows, nb_columns), dtype=jnp.float32),
            axis=1,
        )
    elif scaling == 1:
        multiplier = math.sqrt(float(nb_columns)) * jnp.ones((nb_rows,), jnp.float32)
    else:
        raise ValueError(f"Invalid scaling {scaling}")
    return multiplier[:, None] * final


# ---------------------------------------------------------------------------
# Tiling helpers
# ---------------------------------------------------------------------------
def _divisors_desc(n):
    return [x for x in range(n, 0, -1) if n % x == 0]


def _pick_group(bh, e, lane_target=256):
    # Batch enough (b*h) heads per grid step that g*E is a few hundred output
    # lanes (fills the MXU and amortizes per-step overhead), but keep
    # nb = bh // g >= 2 so both v7x TensorCores get work on the "parallel" axis.
    cap = max(1, lane_target // max(1, e))
    for g in _divisors_desc(bh):
        if g <= cap and (bh // g >= 2 or bh == 1):
            return g
    return 1


def _seq_tiles_desc(n, cap):
    # Divisors of n that are multiples of 8 (or n itself), descending, capped.
    tiles = []
    for t in range(min(n, cap), 0, -1):
        if n % t == 0 and (t % 8 == 0 or t == n):
            tiles.append(t)
    return tiles if tiles else [n]


def _vmem_estimate(g, tn, d, e, m, isz):
    # Lane-padded per-step VMEM estimate (a last dim of 32 occupies a full
    # 128-lane tile). Budget conservatively so the config also fits v7x (64 MiB).
    pad = lambda x: ((x + 127) // 128) * 128
    pad8 = lambda x: ((x + 7) // 8) * 8
    e1 = e + 1
    tnp, mp8 = pad8(tn), pad8(m)
    kv_in = 2 * g * tnp * (pad(d) + pad(e)) * isz      # double-buffered k/q + v tiles
    proj_b = 2 * pad8(d) * pad(m) * isz                # resident projection
    acc = g * mp8 * pad(e1) * 4                        # f32 accumulator scratch
    ctx_io = 2 * g * mp8 * pad(e1) * isz               # ctx in/out blocks
    out_b = 2 * g * tnp * pad(e) * isz                 # phase-2 output tile
    inter = g * tnp * pad(m) * (8 + isz)               # x_dash f32 + exp tmp + x'
    return kv_in + proj_b + acc + ctx_io + out_b + inter


def _pick_tiles(bh, n, d, e, m, isz, budget=40 * 1024 * 1024, seq_cap=2048):
    g = _pick_group(bh, e)
    tiles = _seq_tiles_desc(n, seq_cap)
    ti, tn = 0, _seq_tiles_desc(n, seq_cap)[0]
    while _vmem_estimate(g, tn, d, e, m, isz) > budget:
        if ti + 1 < len(tiles):
            ti += 1
            tn = tiles[ti]
        elif g > 1:
            g = max(x for x in _divisors_desc(bh) if x < g)
            ti, tn = 0, tiles[0]
        else:
            break
    return g, tn


# ---------------------------------------------------------------------------
# Phase 1: per-head context accumulation  C = k'^T @ [v | 1]
# ---------------------------------------------------------------------------
def _context_kernel(k_ref, v_ref, proj_ref, ctx_ref, acc_ref, *, ratio, eps):
    g, tn, dh = k_ref.shape                 # (G, Tn, D)
    cdt = k_ref.dtype
    ln_ratio = math.log(ratio)

    @pl.when(pl.program_id(1) == 0)
    def _init():
        acc_ref[...] = jnp.zeros_like(acc_ref)

    proj = proj_ref[...]                                             # (D, M)
    m_feat = proj.shape[-1]
    kf = k_ref[...].reshape(g * tn, dh)                              # (G*Tn, D)
    k_dash = jnp.dot(kf, proj, preferred_element_type=jnp.float32)   # (G*Tn, M)
    kf32 = kf.astype(jnp.float32)
    # ratio folded into the exponent: ratio*exp(x) == exp(x + ln ratio)
    k_shift = 0.5 * jnp.sum(kf32 * kf32, axis=-1, keepdims=True) - ln_ratio
    k_prime = (jnp.exp(k_dash - k_shift) + (ratio * eps)).astype(cdt)
    k_prime = k_prime.reshape(g, tn, m_feat)                         # (G, Tn, M)

    # Denominator fused into the context matmul via a VMEM-only ones column.
    v_aug = jnp.concatenate(
        [v_ref[...], jnp.ones((g, tn, 1), dtype=cdt)], axis=-1)      # (G, Tn, E+1)

    # Single batched contraction over the sequence axis:  gnm,gne->gme
    ctx = lax.dot_general(k_prime, v_aug, (((1,), (1,)), ((0,), (0,))),
                          preferred_element_type=jnp.float32)        # (G, M, E+1)
    acc_ref[...] += ctx

    @pl.when(pl.program_id(1) == pl.num_programs(1) - 1)
    def _fin():
        ctx_ref[...] = acc_ref[...].astype(ctx_ref.dtype)


# ---------------------------------------------------------------------------
# Phase 2: per-query-tile output, written directly in (bh, n, E) layout
# ---------------------------------------------------------------------------
def _output_kernel(q_ref, ctx_ref, proj_ref, o_ref, *, ratio, eps):
    g, tq, dh = q_ref.shape                 # (G, Tq, D)
    e1 = ctx_ref.shape[-1]                  # E + 1 (last column = denominator)
    e = e1 - 1
    cdt = q_ref.dtype
    ln_ratio = math.log(ratio)

    proj = proj_ref[...]
    m_feat = proj.shape[-1]
    qf = q_ref[...].reshape(g * tq, dh)
    q_dash = jnp.dot(qf, proj, preferred_element_type=jnp.float32)   # (G*Tq, M)
    qf32 = qf.astype(jnp.float32)
    q_shift = 0.5 * jnp.sum(qf32 * qf32, axis=-1, keepdims=True) - ln_ratio
    q_prime = (jnp.exp(q_dash - q_shift) + (ratio * eps)).astype(cdt)
    q_prime = q_prime.reshape(g, tq, m_feat)                         # (G, Tq, M)

    # Single batched matmul:  gqm,gme->gqe   (ctx already in the compute dtype)
    out_aug = lax.dot_general(q_prime, ctx_ref[...], (((2,), (1,)), ((0,), (0,))),
                              preferred_element_type=jnp.float32)    # (G, Tq, E+1)
    denom = out_aug[..., e:e1]                                       # (G, Tq, 1)
    d_inv = pl.reciprocal(denom, approx=True)                        # EUP slot
    d_inv = d_inv * (2.0 - denom * d_inv)                            # one Newton step
    o_ref[...] = (out_aug[..., :e] * d_inv).astype(o_ref.dtype)      # (G, Tq, E)


# ---------------------------------------------------------------------------
# Wrapper
# ---------------------------------------------------------------------------
def enla_forward(q, k, v, projection_matrix, eps=1e-4):
    """ENLA forward (default path: no_projection=False, generalized_attention=False)."""
    b, h, n, d = q.shape
    e = v.shape[-1]
    m = projection_matrix.shape[0]
    ratio = float(m) ** (-0.5)
    bh = b * h
    cdt = q.dtype
    isz = jnp.dtype(cdt).itemsize
    e1 = e + 1

    # Host-side layout plumbing (once): projection pre-transposed to (D, M)
    # and pre-cast; q/k/v flattened to head-major (bh, n, .) — no extra copies.
    proj_t = projection_matrix.T.astype(cdt)                          # (D, M)
    qf = q.reshape(bh, n, d)
    kf = k.reshape(bh, n, d).astype(cdt)
    vf = v.reshape(bh, n, e).astype(cdt)

    g, tn = _pick_tiles(bh, n, d, e, m, isz)   # heads per step, sequence tile
    nb = bh // g
    nt = n // tn
    vmem_limit = 48 * 1024 * 1024              # fits v5e/v6e (128 MiB) and v7x (64 MiB)

    # -------------------- phase 1: context accumulation --------------------
    ctx_cost = pl.CostEstimate(
        flops=int(2 * bh * n * m * (d + e1)),
        transcendentals=int(bh * n * m),
        bytes_accessed=int(bh * n * (d + e) * isz + d * m * isz + bh * m * e1 * isz),
    )
    ctx = pl.pallas_call(
        functools.partial(_context_kernel, ratio=ratio, eps=eps),
        out_shape=jax.ShapeDtypeStruct((bh, m, e1), cdt),             # compute dtype
        grid=(nb, nt),
        in_specs=[
            pl.BlockSpec((g, tn, d), lambda i, j: (i, j, 0)),
            pl.BlockSpec((g, tn, e), lambda i, j: (i, j, 0)),
            pl.BlockSpec((d, m), lambda i, j: (0, 0)),                # resident block
        ],
        out_specs=pl.BlockSpec((g, m, e1), lambda i, j: (i, 0, 0)),
        scratch_shapes=[pltpu.VMEM((g, m, e1), jnp.float32)],
        compiler_params=pltpu.CompilerParams(
            dimension_semantics=("parallel", "arbitrary"),
            vmem_limit_bytes=vmem_limit,
        ),
        cost_estimate=ctx_cost,
    )(kf, vf, proj_t)

    # ---------------- phase 2: query tiles -> final-layout output ----------
    out_cost = pl.CostEstimate(
        flops=int(2 * bh * n * m * (d + e1)),
        transcendentals=int(bh * n * m),
        bytes_accessed=int(bh * n * d * isz + bh * m * e1 * isz + d * m * isz
                           + bh * n * e * isz),
    )
    out = pl.pallas_call(
        functools.partial(_output_kernel, ratio=ratio, eps=eps),
        out_shape=jax.ShapeDtypeStruct((bh, n, e), cdt),
        grid=(nb, nt),
        in_specs=[
            pl.BlockSpec((g, tn, d), lambda i, j: (i, j, 0)),
            pl.BlockSpec((g, m, e1), lambda i, j: (i, 0, 0)),
            pl.BlockSpec((d, m), lambda i, j: (0, 0)),
        ],
        out_specs=pl.BlockSpec((g, tn, e), lambda i, j: (i, j, 0)),
        compiler_params=pltpu.CompilerParams(
            dimension_semantics=("parallel", "parallel"),
            vmem_limit_bytes=vmem_limit,
        ),
        cost_estimate=out_cost,
    )(qf, ctx, proj_t)

    # already head-major: free reshape, no transpose / extra HBM pass
    return out.reshape(b, h, n, e)


# ---------------------------------------------------------------------------
# Pure-JAX reference (mirrors the PyTorch forward) for a correctness check.
# ---------------------------------------------------------------------------
def enla_reference(q, k, v, projection_matrix, eps=1e-4):
    ratio = projection_matrix.shape[0] ** (-0.5)

    def feat(x):
        x_dash = jnp.einsum("bhid,jd->bhij", x, projection_matrix)
        diag = 0.5 * jnp.sum(x * x, axis=-1, keepdims=True)
        return ratio * (jnp.exp(x_dash - diag) + eps)

    qp, kp = feat(q), feat(k)
    k_cumsum = kp.sum(axis=-2)
    d_inv = 1.0 / jnp.einsum("bhnd,bhd->bhn", qp, k_cumsum)
    context = jnp.einsum("bhnd,bhne->bhde", kp, v)
    return jnp.einsum("bhde,bhnd,bhn->bhne", context, qp, d_inv)


if __name__ == "__main__":
    key = jax.random.PRNGKey(0)
    k_proj, k_q, k_k, k_v = jax.random.split(key, 4)

    # Small shapes consistent with the module: (B, H, N, dim_heads)
    B, H, N, DIM_HEADS = 2, 2, 16, 32
    NB_FEATURES = 64  # nb_features passed explicitly to the module constructor

    projection_matrix = gaussian_orthogonal_random_matrix(
        k_proj, NB_FEATURES, DIM_HEADS, scaling=0
    )

    q = jax.random.normal(k_q, (B, H, N, DIM_HEADS), dtype=jnp.float32) * 0.5
    k = jax.random.normal(k_k, (B, H, N, DIM_HEADS), dtype=jnp.float32) * 0.5
    v = jax.random.normal(k_v, (B, H, N, DIM_HEADS), dtype=jnp.float32)

    out = jax.block_until_ready(enla_forward(q, k, v, projection_matrix))
    ref = jax.block_until_ready(enla_reference(q, k, v, projection_matrix))

    assert out.shape == (B, H, N, DIM_HEADS)
    # tolerance accounts for the approx-reciprocal + Newton path and the
    # ratio-folded exponent (FP reassociation)
    assert jnp.allclose(out, ref, atol=2e-4, rtol=2e-4), "mismatch vs reference"

    print("KERNEL_OK")
</pallas_src>

<mosaic_0001>
module attributes {stable_mosaic.version = 11 : i64} {
  func.func @_context_kernel(%arg0: i32, %arg1: i32, %arg2: memref<2x16x32xf32, #tpu.memory_space<vmem>>, %arg3: memref<2x16x32xf32, #tpu.memory_space<vmem>>, %arg4: memref<32x64xf32, #tpu.memory_space<vmem>>, %arg5: memref<2x64x33xf32, #tpu.memory_space<vmem>>, %arg6: memref<2x64x33xf32, #tpu.memory_space<vmem>>) attributes {dimension_semantics = [#tpu.dimension_semantics<parallel>, #tpu.dimension_semantics<arbitrary>], iteration_bounds = array<i64: 2, 1>, scalar_prefetch = 0 : i64, scratch_operands = 1 : i64, tpu.core_type = #tpu.core_type<tc>, window_params = [{transform_indices = @transform_0, window_bounds = array<i64: 2, 16, 32>}, {transform_indices = @transform_1, window_bounds = array<i64: 2, 16, 32>}, {pipeline_mode = #tpu.pipeline_mode<synchronous>, transform_indices = @transform_2, window_bounds = array<i64: 32, 64>}, {transform_indices = @transform_3, window_bounds = array<i64: 2, 64, 33>}]} {
    %c0_i32 = arith.constant 0 : i32
    %0 = arith.cmpi eq, %arg1, %c0_i32 : i32
    %1 = arith.extui %0 : i1 to i32
    %c0_i32_0 = arith.constant 0 : i32
    %2 = arith.cmpi ne, %1, %c0_i32_0 : i32
    scf.if %2 {
      %cst_22 = arith.constant 0.000000e+00 : f32
      %30 = vector.broadcast %cst_22 : f32 to vector<2x64x33xf32>
      %c0_23 = arith.constant 0 : index
      %c0_24 = arith.constant 0 : index
      %c0_25 = arith.constant 0 : index
      %31 = vector.load %arg6[%c0_23, %c0_24, %c0_25] : memref<2x64x33xf32, #tpu.memory_space<vmem>>, vector<2x64x33xf32>
      tpu.vector_store %arg6[%c0_23, %c0_24, %c0_25], %30 {strides = array<i32>} : memref<2x64x33xf32, #tpu.memory_space<vmem>>, vector<2x64x33xf32>,
    } else {
    }
    %c0 = arith.constant 0 : index
    %c0_1 = arith.constant 0 : index
    %3 = vector.load %arg4[%c0, %c0_1] : memref<32x64xf32, #tpu.memory_space<vmem>>, vector<32x64xf32>
    %c0_2 = arith.constant 0 : index
    %c0_3 = arith.constant 0 : index
    %c0_4 = arith.constant 0 : index
    %4 = vector.load %arg2[%c0_2, %c0_3, %c0_4] : memref<2x16x32xf32, #tpu.memory_space<vmem>>, vector<2x16x32xf32>
    %5 = vector.shape_cast %4 : vector<2x16x32xf32> to vector<32x32xf32>
    %cst = arith.constant dense<0.000000e+00> : vector<32x64xf32>
    %6 = tpu.matmul %5, %3, %cst {dimension_numbers = #tpu.dot_dimension_numbers<[1], [0], [0], [1], [0, 0, 1, 1], [], []>} : vector<32x32xf32>, vector<32x64xf32>, vector<32x64xf32> -> vector<32x64xf32>
    %7 = arith.mulf %5, %5 : vector<32x32xf32>
    %cst_5 = arith.constant dense<0.000000e+00> : vector<32xf32>
    %8 = vector.multi_reduction <add>, %7, %cst_5 [1] : vector<32x32xf32> to vector<32xf32>
    %9 = vector.shape_cast %8 : vector<32xf32> to vector<32x1xf32>
    %cst_6 = arith.constant 5.000000e-01 : f32
    %10 = vector.broadcast %cst_6 : f32 to vector<32x1xf32>
    %11 = arith.mulf %10, %9 : vector<32x1xf32>
    %cst_7 = arith.constant -2.07944155 : f32
    %12 = vector.broadcast %cst_7 : f32 to vector<32x1xf32>
    %13 = arith.subf %11, %12 : vector<32x1xf32>
    %14 = vector.broadcast %13 : vector<32x1xf32> to vector<32x64xf32>
    %15 = arith.subf %6, %14 : vector<32x64xf32>
    %16 = math.exp %15 : vector<32x64xf32>
    %cst_8 = arith.constant 1.250000e-05 : f32
    %17 = vector.broadcast %cst_8 : f32 to vector<32x64xf32>
    %18 = arith.addf %16, %17 : vector<32x64xf32>
    %19 = vector.shape_cast %18 : vector<32x64xf32> to vector<2x16x64xf32>
    %c0_9 = arith.constant 0 : index
    %c0_10 = arith.constant 0 : index
    %c0_11 = arith.constant 0 : index
    %20 = vector.load %arg3[%c0_9, %c0_10, %c0_11] : memref<2x16x32xf32, #tpu.memory_space<vmem>>, vector<2x16x32xf32>
    %cst_12 = arith.constant 1.000000e+00 : f32
    %21 = vector.broadcast %cst_12 : f32 to vector<2x16x1xf32>
    %22 = tpu.concatenate %20, %21 in 2 : vector<2x16x32xf32>, vector<2x16x1xf32> -> vector<2x16x33xf32>
    %cst_13 = arith.constant dense<0.000000e+00> : vector<2x64x33xf32>
    %23 = tpu.matmul %19, %22, %cst_13 {dimension_numbers = #tpu.dot_dimension_numbers<[1], [1], [2], [2], [0, 0, 0, 2, 1, 2], [0], [0]>} : vector<2x16x64xf32>, vector<2x16x33xf32>, vector<2x64x33xf32> -> vector<2x64x33xf32>
    %c0_14 = arith.constant 0 : index
    %c0_15 = arith.constant 0 : index
    %c0_16 = arith.constant 0 : index
    %24 = vector.load %arg6[%c0_14, %c0_15, %c0_16] : memref<2x64x33xf32, #tpu.memory_space<vmem>>, vector<2x64x33xf32>
    %25 = arith.addf %24, %23 : vector<2x64x33xf32>
    %c0_17 = arith.constant 0 : index
    %c0_18 = arith.constant 0 : index
    %c0_19 = arith.constant 0 : index
    %26 = vector.load %arg6[%c0_17, %c0_18, %c0_19] : memref<2x64x33xf32, #tpu.memory_space<vmem>>, vector<2x64x33xf32>
    tpu.vector_store %arg6[%c0_17, %c0_18, %c0_19], %25 {strides = array<i32>} : memref<2x64x33xf32, #tpu.memory_space<vmem>>, vector<2x64x33xf32>,
    %c0_i32_20 = arith.constant 0 : i32
    %27 = arith.cmpi eq, %arg1, %c0_i32_20 : i32
    %28 = arith.extui %27 : i1 to i32
    %c0_i32_21 = arith.constant 0 : i32
    %29 = arith.cmpi ne, %28, %c0_i32_21 : i32
    scf.if %29 {
      %c0_22 = arith.constant 0 : index
      %c0_23 = arith.constant 0 : index
      %c0_24 = arith.constant 0 : index
      %30 = vector.load %arg6[%c0_22, %c0_23, %c0_24] : memref<2x64x33xf32, #tpu.memory_space<vmem>>, vector<2x64x33xf32>
      %c0_25 = arith.constant 0 : index
      %c0_26 = arith.constant 0 : index
      %c0_27 = arith.constant 0 : index
      %31 = vector.load %arg5[%c0_25, %c0_26, %c0_27] : memref<2x64x33xf32, #tpu.memory_space<vmem>>, vector<2x64x33xf32>
      tpu.vector_store %arg5[%c0_25, %c0_26, %c0_27], %30 {strides = array<i32>} : memref<2x64x33xf32, #tpu.memory_space<vmem>>, vector<2x64x33xf32>,
    } else {
    }
    return
  }
  func.func @transform_0(%arg0: i32, %arg1: i32) -> (i32, i32, i32) {
    %c0_i32 = arith.constant 0 : i32
    %c0_i32_0 = arith.constant 0 : i32
    return %arg0, %arg1, %c0_i32 : i32, i32, i32
  }
  func.func @transform_1(%arg0: i32, %arg1: i32) -> (i32, i32, i32) {
    %c0_i32 = arith.constant 0 : i32
    %c0_i32_0 = arith.constant 0 : i32
    return %arg0, %arg1, %c0_i32 : i32, i32, i32
  }
  func.func @transform_2(%arg0: i32, %arg1: i32) -> (i32, i32) {
    %c0_i32 = arith.constant 0 : i32
    %c0_i32_0 = arith.constant 0 : i32
    %c0_i32_1 = arith.constant 0 : i32
    return %c0_i32, %c0_i32_0 : i32, i32
  }
  func.func @transform_3(%arg0: i32, %arg1: i32) -> (i32, i32, i32) {
    %c0_i32 = arith.constant 0 : i32
    %c0_i32_0 = arith.constant 0 : i32
    %c0_i32_1 = arith.constant 0 : i32
    return %arg0, %c0_i32, %c0_i32_0 : i32, i32, i32
  }
}

</mosaic_0001>

<llo_original>
// kernel: tpu_custom_call.1
$region0: #{tpu_custom_call.1}
  #allocation0 [shape = 'u32[]', space=smem, size = 0x4, offset = 0x4, fixed_abs, tag = 'smem constant byte address 0x4 - core index']
  #allocation1 [shape = 'u32[144,128]{1,0:T(1,128)}', space=vmem, size = 0x12000, scoped, tag = 'internal scratch']
  #allocation2 [shape = 'f32[2,64,33]{2,1,0:T(8,128)}', space=vmem, size = 0x10000, scoped, tag = 'scratch operand']
  %s0 = inlined_call_operand.hbm [shape: f32[4,16,32], index: 0, kind: input, shape index: {}]
  %s1 = inlined_call_operand.hbm [shape: f32[4,16,32], index: 1, kind: input, shape index: {}]
  %s2 = inlined_call_operand.hbm [shape: f32[32,64], index: 2, kind: input, shape index: {}]
  %s3 = inlined_call_operand.vmem [shape: f32[4,64,33], index: 3, kind: output, shape index: {}]
  %s4 = sld [smem:[#allocation0]]
  $region65: #{tpu_custom_call.1} parent=0
    _
  %s6 = ssub.s32 1, %s4
  %s7 = scalar_select 0, %s6, %s4
  $region1: #{tpu_custom_call.1} parent=0
    #allocation3 [shape = 'u8[32768]{0}', space=vmem, size = 0x8000, scoped, tag = 'input window, operand 0']
    #allocation4 [shape = 's32[2]{0}', space=sflag, size = 0x8, scoped, tag = 'scoped memory for tpu_custom_call.1']
    #allocation5 [shape = 'u8[32768]{0}', space=vmem, size = 0x8000, scoped, tag = 'input window, operand 1']
    #allocation6 [shape = 's32[2]{0}', space=sflag, size = 0x8, scoped, tag = 'scoped memory for tpu_custom_call.1']
    #allocation7 [shape = 'u8[16384]{0}', space=vmem, size = 0x4000, scoped, tag = 'input window, operand 2, single buffered']
    %8 = vsyncpa [#allocation4], 0
    %s9 = scalar_lea.sflag [#allocation4], 1
    %10 = vsyncpa %s9, 0
    %11 = vsyncpa [#allocation6], 0
    %s12 = scalar_lea.sflag [#allocation6], 1
    %13 = vsyncpa %s12, 0
    loop: start=0, step=1, limit=4
    $region2: #{tpu_custom_call.1} parent=1 // loop_pre_header
      _
    $region3: #{tpu_custom_call.1} parent=1 // loop_header
      %s15 = sphi 0, %s19
      %p16 = scmp.ge.s32.totalorder %s15, 4
      %s22 = sphi 0, %s34
      %s23 = sphi 0, %s30
      %s24 = sphi 0, %s22
      %s25 = sphi 0, %s23
      %s26 = sphi 0, %s24
      %s27 = sphi 0, %s25
      %s39 = sphi 0, %s41
      %s42 = sphi 0, %s39
      %s43 = sphi 0, %s42
      %s59 = sphi 0, %s43
      %s67 = sphi 0, %s69
      %s70 = sphi 0, %s67
      %s71 = sphi 0, %s70
      %s87 = sphi 0, %s71
      %s91 = sphi 0, %s91
      %s93 = sphi 0, %s91
      %s94 = sphi 0, %s93
      %s108 = sphi 0, %s94
      %s114 = sphi 0, %s116
      %s117 = sphi 0, %s114
      %s118 = sphi 0, %s117
      %s134 = sphi 0, %s118
    $region4: #{tpu_custom_call.1} parent=1 // loop_header_branch
      %18 = sbr.rel (%p16) target = $region8
    $region5: #{tpu_custom_call.1} parent=1 // loop_body
      %s20 = ssub.s32 %s15, 1
      %s21 = ssub.s32 %s15, 2
      %s28 = sadd.s32 1, %s23
      %p29 = scmp.ge.s32.totalorder %s28, 1
      %s30 = scalar_select %p29, 0, %s28
      %s31 = sadd.s32 1, %s22
      %s32 = scalar_select %p29, %s31, %s22
      %p33 = scmp.ge.s32.totalorder %s32, 2
      %s34 = scalar_select %p33, 0, %s32
      %s35 = ssub.s32 %s22, %s34
      %s36 = ssub.s32 %s23, %s30
      %s37 = sor.u32 %s35, %s36
      %p38 = scmp.eq.s32.totalorder %s37, 0
      %s40 = sadd.s32 %s39, 1
      %s41 = scalar_select %p38, %s39, %s40
      %p44 = pneg %p38
      %p45 = scmp.eq.s32.totalorder %s15, 1
      %p46 = por %p44, %p45
      %p47 = scmp.ne.s32.totalorder %s39, %s42
      %p48 = scmp.eq.s32.totalorder %s15, 0
      %p49 = por %p47, %p48
      %p50 = scmp.ne.s32.totalorder %s39, %s42
      %p51 = scmp.eq.s32.totalorder %s20, 1
      %p52 = por %p50, %p51
      %p53 = scmp.ne.s32.totalorder %s42, %s43
      %p54 = scmp.eq.s32.totalorder %s20, 0
      %p55 = por %p53, %p54
      %p56 = scmp.ne.s32.totalorder %s42, %s43
      %p57 = scmp.eq.s32.totalorder %s21, 1
      %p58 = por %p56, %p57
      %p60 = scmp.ne.s32.totalorder %s43, %s59
      %p61 = scmp.eq.s32.totalorder %s21, 0
      %p62 = por %p60, %p61
      %s63 = ssub.s32 %s22, %s34
      %s64 = ssub.s32 %s23, %s30
      %s65 = sor.u32 %s63, %s64
      %p66 = scmp.eq.s32.totalorder %s65, 0
      %s68 = sadd.s32 %s67, 1
      %s69 = scalar_select %p66, %s67, %s68
      %p72 = pneg %p66
      %p73 = scmp.eq.s32.totalorder %s15, 1
      %p74 = por %p72, %p73
      %p75 = scmp.ne.s32.totalorder %s67, %s70
      %p76 = scmp.eq.s32.totalorder %s15, 0
      %p77 = por %p75, %p76
      %p78 = scmp.ne.s32.totalorder %s67, %s70
      %p79 = scmp.eq.s32.totalorder %s20, 1
      %p80 = por %p78, %p79
      %p81 = scmp.ne.s32.totalorder %s70, %s71
      %p82 = scmp.eq.s32.totalorder %s20, 0
      %p83 = por %p81, %p82
      %p84 = scmp.ne.s32.totalorder %s70, %s71
      %p85 = scmp.eq.s32.totalorder %s21, 1
      %p86 = por %p84, %p85
      %p88 = scmp.ne.s32.totalorder %s71, %s87
      %p89 = scmp.eq.s32.totalorder %s21, 0
      %p90 = por %p88, %p89
      %s92 = sadd.s32 %s91, 1
      %p95 = scmp.eq.s32.totalorder %s15, 1
      %p96 = scmp.ne.s32.totalorder %s91, %s93
      %p97 = scmp.eq.s32.totalorder %s15, 0
      %p98 = por %p96, %p97
      %p99 = scmp.ne.s32.totalorder %s91, %s93
      %p100 = scmp.eq.s32.totalorder %s20, 1
      %p101 = por %p99, %p100
      %p102 = scmp.ne.s32.totalorder %s93, %s94
      %p103 = scmp.eq.s32.totalorder %s20, 0
      %p104 = por %p102, %p103
      %p105 = scmp.ne.s32.totalorder %s93, %s94
      %p106 = scmp.eq.s32.totalorder %s21, 1
      %p107 = por %p105, %p106
      %p109 = scmp.ne.s32.totalorder %s94, %s108
      %p110 = scmp.eq.s32.totalorder %s21, 0
      %p111 = por %p109, %p110
      %s112 = ssub.s32 %s22, %s34
      %p113 = scmp.eq.s32.totalorder %s112, 0
      %s115 = sadd.s32 %s114, 1
      %s116 = scalar_select %p113, %s114, %s115
      %p119 = pneg %p113
      %p120 = scmp.eq.s32.totalorder %s15, 1
      %p121 = por %p119, %p120
      %p122 = scmp.ne.s32.totalorder %s114, %s117
      %p123 = scmp.eq.s32.totalorder %s15, 0
      %p124 = por %p122, %p123
      %p125 = scmp.ne.s32.totalorder %s114, %s117
      %p126 = scmp.eq.s32.totalorder %s20, 1
      %p127 = por %p125, %p126
      %p128 = scmp.ne.s32.totalorder %s117, %s118
      %p129 = scmp.eq.s32.totalorder %s20, 0
      %p130 = por %p128, %p129
      %p131 = scmp.ne.s32.totalorder %s117, %s118
      %p132 = scmp.eq.s32.totalorder %s21, 1
      %p133 = por %p131, %p132
      %p135 = scmp.ne.s32.totalorder %s118, %s134
      %p136 = scmp.eq.s32.totalorder %s21, 0
      %p137 = por %p135, %p136
      %p138 = scmp.le.s32.totalorder 1, %s15
      %p139 = scmp.lt.s32.totalorder %s15, 3
      %p140 = pnand %p138, %p139
      %p141 = pneg %p140
      // Predicated region
      $region9: #{tpu_custom_call.1} parent=5 // pred_check
        _
      $region10: #{tpu_custom_call.1} parent=5 // pred_check_branch
        %143 = sbr.rel (%p140) target = $region12
      $region11: #{tpu_custom_call.1} parent=5 // pred_region
        %s144 = ssub.s32 %s15, 1
        // Predicated region
        $region13: #{tpu_custom_call.1} parent=11 // pred_check
          %p145 = pneg %p104
        $region14: #{tpu_custom_call.1} parent=11 // pred_check_branch
          %147 = sbr.rel (%p145) target = $region16
        $region15: #{tpu_custom_call.1} parent=11 // pred_region
          %s149 = ssub.s32 512, 512
          %150 = vsyncadd [#allocation6], %s149
          %s151 = sshll.u32 [#allocation7], 4
          %s152 = int_to_ptr.vmem [resolvable:$true] %s151
          %157 = dma.hbm_to_vmem [thread:$0]  %s2, 512, %s152, [#allocation6], 128, 128, 8
        $region16: #{tpu_custom_call.1} parent=11 // pred_fallthru
          _
      $region12: #{tpu_custom_call.1} parent=5 // pred_fallthru
        _
      %p158 = scmp.lt.s32.totalorder %s15, 2
      // Predicated region
      $region17: #{tpu_custom_call.1} parent=5 // pred_check
        %p159 = pneg %p158
      $region18: #{tpu_custom_call.1} parent=5 // pred_check_branch
        %161 = sbr.rel (%p159) target = $region20
      $region19: #{tpu_custom_call.1} parent=5 // pred_region
        // Predicated region
        $region21: #{tpu_custom_call.1} parent=19 // pred_check
          %p162 = pneg %p49
        $region22: #{tpu_custom_call.1} parent=19 // pred_check_branch
          %164 = sbr.rel (%p162) target = $region24
        $region23: #{tpu_custom_call.1} parent=19 // pred_region
          %s165 = sand.u32 %s39, 1
          %s166 = scalar_lea.sflag [#allocation4], %s165
          %s167 = sand.u32 %s39, 1
          %s168 = smul.addr %s167, 32
          %s169 = scalar_lea.vmem [#allocation3], %s168
          %s170 = smul.u32 2, %s22
          %s171 = smul.u32 2, %s23
          %s173 = ssub.s32 512, 512
          %174 = vsyncadd %s166, %s173
          %s175 = smul.addr %s170, 2
          %s176 = sadd.s32 %s171, %s175
          %s177 = smul.addr %s176, 128
          %s178 = scalar_lea.hbm %s0, %s177
          %s179 = sshll.u32 %s169, 4
          %s180 = int_to_ptr.vmem [resolvable:$true] %s179
          %185 = dma.hbm_to_vmem [thread:$0]  %s178, 512, %s180, %s166, 128, 128, 8
        $region24: #{tpu_custom_call.1} parent=19 // pred_fallthru
          _
        // Predicated region
        $region25: #{tpu_custom_call.1} parent=19 // pred_check
          %p186 = pneg %p77
        $region26: #{tpu_custom_call.1} parent=19 // pred_check_branch
          %188 = sbr.rel (%p186) target = $region28
        $region27: #{tpu_custom_call.1} parent=19 // pred_region
          %s189 = sand.u32 %s15, 1
          %s190 = scalar_lea.sflag [#allocation6], %s189
          %s191 = sand.u32 %s67, 1
          %s192 = smul.addr %s191, 32
          %s193 = scalar_lea.vmem [#allocation5], %s192
          %s194 = smul.u32 2, %s22
          %s195 = smul.u32 2, %s23
          %s197 = ssub.s32 512, 512
          %198 = vsyncadd %s190, %s197
          %s199 = smul.addr %s194, 2
          %s200 = sadd.s32 %s195, %s199
          %s201 = smul.addr %s200, 128
          %s202 = scalar_lea.hbm %s1, %s201
          %s203 = sshll.u32 %s193, 4
          %s204 = int_to_ptr.vmem [resolvable:$true] %s203
          %209 = dma.hbm_to_vmem [thread:$0]  %s202, 512, %s204, %s190, 128, 128, 8
        $region28: #{tpu_custom_call.1} parent=19 // pred_fallthru
          _
      $region20: #{tpu_custom_call.1} parent=5 // pred_fallthru
        _
      %p210 = scmp.le.s32.totalorder 1, %s15
      %p211 = scmp.lt.s32.totalorder %s15, 3
      %p212 = pnand %p210, %p211
      %p213 = pneg %p212
      // Predicated region
      $region29: #{tpu_custom_call.1} parent=5 // pred_check
        _
      $region30: #{tpu_custom_call.1} parent=5 // pred_check_branch
        %215 = sbr.rel (%p212) target = $region32
      $region31: #{tpu_custom_call.1} parent=5 // pred_region
        %s216 = ssub.s32 %s15, 1
        %s217 = sand.u32 %s42, 1
        %s218 = scalar_lea.sflag [#allocation4], %s217
        %s219 = sand.u32 %s42, 1
        %s220 = smul.addr %s219, 32
        %s221 = scalar_lea.vmem [#allocation3], %s220
        // Predicated region
        $region33: #{tpu_custom_call.1} parent=31 // pred_check
          %p222 = pneg %p55
        $region34: #{tpu_custom_call.1} parent=31 // pred_check_branch
          %224 = sbr.rel (%p222) target = $region36
        $region35: #{tpu_custom_call.1} parent=31 // pred_region
          %225 = dma.done %s218, 512
        $region36: #{tpu_custom_call.1} parent=31 // pred_fallthru
          _
        %s226 = sand.u32 %s20, 1
        %s227 = scalar_lea.sflag [#allocation6], %s226
        %s228 = sand.u32 %s70, 1
        %s229 = smul.addr %s228, 32
        %s230 = scalar_lea.vmem [#allocation5], %s229
        // Predicated region
        $region37: #{tpu_custom_call.1} parent=31 // pred_check
          %p231 = pneg %p83
        $region38: #{tpu_custom_call.1} parent=31 // pred_check_branch
          %233 = sbr.rel (%p231) target = $region40
        $region39: #{tpu_custom_call.1} parent=31 // pred_region
          %234 = dma.done %s227, 512
        $region40: #{tpu_custom_call.1} parent=31 // pred_fallthru
          _
        // Predicated region
        $region41: #{tpu_custom_call.1} parent=31 // pred_check
          %p235 = pneg %p104
        $region42: #{tpu_custom_call.1} parent=31 // pred_check_branch
          %237 = sbr.rel (%p235) target = $region44
        $region43: #{tpu_custom_call.1} parent=31 // pred_region
          %238 = dma.done [#allocation6], 512
        $region44: #{tpu_custom_call.1} parent=31 // pred_fallthru
          _
        %s239 = sand.u32 %s42, 1
        %s240 = scalar_lea.sflag [#allocation4], %s239
        %s241 = sand.u32 %s42, 1
        %s242 = smul.addr %s241, 32
        %s243 = scalar_lea.vmem [#allocation3], %s242
        %p244 = pneg %p55
        %p245 = pneg %p52
        %s246 = sand.u32 %s20, 1
        %s247 = scalar_lea.sflag [#allocation6], %s246
        %s248 = sand.u32 %s70, 1
        %s249 = smul.addr %s248, 32
        %s250 = scalar_lea.vmem [#allocation5], %s249
        %p251 = pneg %p83
        %p252 = pneg %p80
        %p253 = pneg %p104
        %p254 = pneg %p101
        %p255 = pneg %p130
        %p256 = pneg %p127
        %s257 = smul.u32 2, %s24
        %p258 = scmp.lt.s32.totalorder %s257, 3
        %s259 = scalar_select %p258, %s257, 3
        %s260 = smul.addr %s259, 8
        %s261 = smul.addr %s260, 8
        %s262 = scalar_lea.vmem %s3, %s261
        %s263 = smul.u32 2, %s24
        %s264 = smul.u32 2, %s25
        %s265 = smul.u32 2, %s24
        %s266 = smul.u32 2, %s25
        %s267 = smul.u32 2, %s24
        %p268 = scmp.lt.s32.totalorder %s267, 3
        %s269 = scalar_select %p268, %s267, 3
        %s270 = smul.addr %s269, 8
        %s271 = smul.addr %s270, 8
        %s272 = scalar_lea.vmem %s3, %s271
        %s273 = smul.u32 2, %s24
        %p274 = scmp.eq.s32.totalorder %s25, 0
        // Predicated region
        $region45: #{tpu_custom_call.1} parent=31 // pred_check
          %p275 = pneg %p274
        $region46: #{tpu_custom_call.1} parent=31 // pred_check_branch
          %277 = sbr.rel (%p275) target = $region48
        $region47: #{tpu_custom_call.1} parent=31 // pred_region
          %vm278 = vcmask 269312
          %279 = vst.msk [vmem:[#allocation2] sm:$0xff] %vm278, 0.0
          %280 = vst.msk [vmem:[#allocation2 + $0x8] sm:$0xff] %vm278, 0.0
          %281 = vst.msk [vmem:[#allocation2 + $0x10] sm:$0xff] %vm278, 0.0
          %282 = vst.msk [vmem:[#allocation2 + $0x18] sm:$0xff] %vm278, 0.0
          %283 = vst.msk [vmem:[#allocation2 + $0x20] sm:$0xff] %vm278, 0.0
          %284 = vst.msk [vmem:[#allocation2 + $0x28] sm:$0xff] %vm278, 0.0
          %285 = vst.msk [vmem:[#allocation2 + $0x30] sm:$0xff] %vm278, 0.0
          %286 = vst.msk [vmem:[#allocation2 + $0x38] sm:$0xff] %vm278, 0.0
          %287 = vst.msk [vmem:[#allocation2 + $0x40] sm:$0xff] %vm278, 0.0
          %288 = vst.msk [vmem:[#allocation2 + $0x48] sm:$0xff] %vm278, 0.0
          %289 = vst.msk [vmem:[#allocation2 + $0x50] sm:$0xff] %vm278, 0.0
          %290 = vst.msk [vmem:[#allocation2 + $0x58] sm:$0xff] %vm278, 0.0
          %291 = vst.msk [vmem:[#allocation2 + $0x60] sm:$0xff] %vm278, 0.0
          %292 = vst.msk [vmem:[#allocation2 + $0x68] sm:$0xff] %vm278, 0.0
          %293 = vst.msk [vmem:[#allocation2 + $0x70] sm:$0xff] %vm278, 0.0
          %294 = vst.msk [vmem:[#allocation2 + $0x78] sm:$0xff] %vm278, 0.0
        $region48: #{tpu_custom_call.1} parent=31 // pred_fallthru
          _
        %v295 = vld [vmem:[#allocation7] sm:$0xff]
        %v296 = vld [vmem:[#allocation7 + $0x8] sm:$0xff]
        %v297 = vld [vmem:[#allocation7 + $0x10] sm:$0xff]
        %v298 = vld [vmem:[#allocation7 + $0x18] sm:$0xff]
        %v299 = vld [vmem:[%s221] sm:$0xff]
        %v300 = vld [vmem:[%s221 + $0x8] sm:$0xff]
        %v301 = vld [vmem:[%s221 + $0x10] sm:$0xff]
        %v302 = vld [vmem:[%s221 + $0x18] sm:$0xff]
        %vm303 = vcmask 261120
        %v305 = vsel %vm303, %v299, 0
        %v308 = vsel %vm303, %v300, 0
        %v311 = vsel %vm303, %v301, 0
        %v314 = vsel %vm303, %v302, 0
        %316 = vmatprep.subr.mxu0 0.0
        %317 = vmatpush1.msra.mxu0 %v295
        %318 = vmatprep.subr.mxu0 0.0
        %319 = vmatpush1.msra.mxu0 %v296
        %320 = vmatprep.subr.mxu0 0.0
        %321 = vmatpush1.msra.mxu0 %v297
        %322 = vmatprep.subr.mxu0 0.0
        %323 = vmatpush1.msra.mxu0 %v298
        %324 = vmatprep.subr.mxu0 0.0
        %325 = vmatpush1.msra.mxu0 0.0
        %326 = vmatprep.subr.mxu0 0.0
        %327 = vmatpush1.msra.mxu0 0.0
        %328 = vmatprep.subr.mxu0 0.0
        %329 = vmatpush1.msra.mxu0 0.0
        %330 = vmatprep.subr.mxu0 0.0
        %331 = vmatpush1.msra.mxu0 0.0
        %332 = vmatprep.subr.mxu0 0.0
        %333 = vmatpush1.msra.mxu0 0.0
        %334 = vmatprep.subr.mxu0 0.0
        %335 = vmatpush1.msra.mxu0 0.0
        %336 = vmatprep.subr.mxu0 0.0
        %337 = vmatpush1.msra.mxu0 0.0
        %338 = vmatprep.subr.mxu0 0.0
        %339 = vmatpush1.msra.mxu0 0.0
        %340 = vmatprep.subr.mxu0 0.0
        %341 = vmatpush1.msra.mxu0 0.0
        %342 = vmatprep.subr.mxu0 0.0
        %343 = vmatpush1.msra.mxu0 0.0
        %344 = vmatprep.subr.mxu0 0.0
        %345 = vmatpush1.msra.mxu0 0.0
        %346 = vmatprep.subr.mxu0 0.0
        %347 = vmatpush1.msra.mxu0 0.0
        %348 = vmatprep.subr.mxu0 0.0
        %349 = vmatpush1.msra.mxu0 0.0
        %350 = vmatprep.subr.mxu0 0.0
        %351 = vmatpush1.msra.mxu0 0.0
        %352 = vmatprep.subr.mxu0 0.0
        %353 = vmatpush1.msra.mxu0 0.0
        %354 = vmatprep.subr.mxu0 0.0
        %355 = vmatpush1.msra.mxu0 0.0
        %356 = vmatprep.subr.mxu0 0.0
        %357 = vmatpush1.msra.mxu0 0.0
        %358 = vmatprep.subr.mxu0 0.0
        %359 = vmatpush1.msra.mxu0 0.0
        %360 = vmatprep.subr.mxu0 0.0
        %361 = vmatpush1.msra.mxu0 0.0
        %362 = vmatprep.subr.mxu0 0.0
        %363 = vmatpush1.msra.mxu0 0.0
        %364 = vmatprep.subr.mxu0 0.0
        %365 = vmatpush1.msra.mxu0 0.0
        %366 = vmatprep.subr.mxu0 0.0
        %367 = vmatpush1.msra.mxu0 0.0
        %368 = vmatprep.subr.mxu0 0.0
        %369 = vmatpush1.msra.mxu0 0.0
        %370 = vmatprep.subr.mxu0 0.0
        %371 = vmatpush1.msra.mxu0 0.0
        %372 = vmatprep.subr.mxu0 0.0
        %373 = vmatpush1.msra.mxu0 0.0
        %374 = vmatprep.subr.mxu0 0.0
        %375 = vmatpush1.msra.mxu0 0.0
        %376 = vmatprep.subr.mxu0 0.0
        %377 = vmatpush1.msra.mxu0 0.0
        %378 = vmatprep.subr.mxu0 0.0
        %379 = vmatpush1.msra.mxu0 0.0
        %380 = vmatprep.mubr.f32.mxu0 0.0
        %381 = vmatmul.mubr.f32.gmra.mrb[0].mxu0 %v305
        %v382 = vpop.f32.mrb[0].mxu0
        %v383 = vadd.f32 0.0, %v382
        %v384 = vpop.f32.mrb[0].mxu0
        %385 = vmatprep.mubr.f32.mxu0 0.0
        %386 = vmatmul.mubr.f32.gmra.mrb[0].mxu0 %v308
        %v387 = vpop.f32.mrb[0].mxu0
        %v388 = vadd.f32 0.0, %v387
        %v389 = vpop.f32.mrb[0].mxu0
        %390 = vmatprep.mubr.f32.mxu0 0.0
        %391 = vmatmul.mubr.f32.gmra.mrb[0].mxu0 %v311
        %v392 = vpop.f32.mrb[0].mxu0
        %v393 = vadd.f32 0.0, %v392
        %v394 = vpop.f32.mrb[0].mxu0
        %395 = vmatprep.mubr.f32.mxu0 0.0
        %396 = vmatmul.mubr.f32.gmra.mrb[0].mxu0 %v314
        %v397 = vpop.f32.mrb[0].mxu0
        %v398 = vadd.f32 0.0, %v397
        %v399 = vpop.f32.mrb[0].mxu0
        %400 = vdwg.mxu0
        %v401 = vmul.f32 %v299, %v299
        %v402 = vmul.f32 %v300, %v300
        %v403 = vmul.f32 %v301, %v301
        %v404 = vmul.f32 %v302, %v302
        %v405 = vsel %vm303, %v401, 0.0
        %406 = vadd.xlane.f32.xlu0 %v405
        %v407 = vpop.xlane.xlu0 %406
        %v408 = vsel %vm303, %v402, 0.0
        %409 = vadd.xlane.f32.xlu0 %v408
        %v410 = vpop.xlane.xlu0 %409
        %v411 = vsel %vm303, %v403, 0.0
        %412 = vadd.xlane.f32.xlu0 %v411
        %v413 = vpop.xlane.xlu0 %412
        %v414 = vsel %vm303, %v404, 0.0
        %415 = vadd.xlane.f32.xlu0 %v414
        %v416 = vpop.xlane.xlu0 %415
        %v417 = vmul.f32 %v407, 0.5
        %v418 = vmul.f32 %v410, 0.5
        %v419 = vmul.f32 %v413, 0.5
        %v420 = vmul.f32 %v416, 0.5
        %v421 = vsub.f32 %v417, -2.0794415
        %v422 = vsub.f32 %v418, -2.0794415
        %v423 = vsub.f32 %v419, -2.0794415
        %v424 = vsub.f32 %v420, -2.0794415
        %v425 = vsub.f32 %v383, %v421
        %v426 = vsub.f32 %v388, %v422
        %v427 = vsub.f32 %v393, %v423
        %v428 = vsub.f32 %v398, %v424
        %v429 = vmul.f32 %v425, 1.442695
        %v430 = vpow.pop %v429
        %v431 = vmul.f32 %v426, 1.442695
        %v432 = vpow.pop %v431
        %v433 = vmul.f32 %v427, 1.442695
        %v434 = vpow.pop %v433
        %v435 = vmul.f32 %v428, 1.442695
        %v436 = vpow.pop %v435
        %v437 = vadd.f32 %v430, 1.25e-05
        %v438 = vadd.f32 %v432, 1.25e-05
        %v439 = vadd.f32 %v434, 1.25e-05
        %v440 = vadd.f32 %v436, 1.25e-05
        %v441 = vld [vmem:[%s230] sm:$0xff]
        %v442 = vld [vmem:[%s230 + $0x8] sm:$0xff]
        %v443 = vld [vmem:[%s230 + $0x10] sm:$0xff]
        %v444 = vld [vmem:[%s230 + $0x18] sm:$0xff]
        %v445 = vsel %vm303, %v441, 1.0
        %v446 = vsel %vm303, %v442, 1.0
        %v447 = vsel %vm303, %v443, 1.0
        %v448 = vsel %vm303, %v444, 1.0
        %449 = vxpose.xlu0.b32.start [1/16] %v437, 128
        %450 = vxpose.xlu0.b32.cont [2/16] %v438, 128
        %451 = vxpose.xlu0.b32.cont [3/16] 0.0, 128
        %452 = vxpose.xlu0.b32.cont [4/16] 0.0, 128
        %453 = vxpose.xlu0.b32.cont [5/16] 0.0, 128
        %454 = vxpose.xlu0.b32.cont [6/16] 0.0, 128
        %455 = vxpose.xlu0.b32.cont [7/16] 0.0, 128
        %456 = vxpose.xlu0.b32.cont [8/16] 0.0, 128
        %457 = vxpose.xlu0.b32.cont [9/16] 0.0, 128
        %458 = vxpose.xlu0.b32.cont [10/16] 0.0, 128
        %459 = vxpose.xlu0.b32.cont [11/16] 0.0, 128
        %460 = vxpose.xlu0.b32.cont [12/16] 0.0, 128
        %461 = vxpose.xlu0.b32.cont [13/16] 0.0, 128
        %462 = vxpose.xlu0.b32.cont [14/16] 0.0, 128
        %463 = vxpose.xlu0.b32.cont [15/16] 0.0, 128
        %464 = vxpose.xlu0.b32.end [16/16] 0.0, 128
        %v465 = vpop.trf.xlu0
        %v466 = vpop.trf.xlu0
        %v467 = vpop.trf.xlu0
        %v468 = vpop.trf.xlu0
        %v469 = vpop.trf.xlu0
        %v470 = vpop.trf.xlu0
        %v471 = vpop.trf.xlu0
        %v472 = vpop.trf.xlu0
        %v473 = vpop.trf.xlu0
        %v474 = vpop.trf.xlu0
        %v475 = vpop.trf.xlu0
        %v476 = vpop.trf.xlu0
        %v477 = vpop.trf.xlu0
        %v478 = vpop.trf.xlu0
        %v479 = vpop.trf.xlu0
        %v480 = vpop.trf.xlu0
        %vm481 = vcmask 130048
        %v483 = vsel %vm481, %v465, 0
        %v486 = vsel %vm481, %v466, 0
        %v489 = vsel %vm481, %v467, 0
        %v492 = vsel %vm481, %v468, 0
        %v495 = vsel %vm481, %v469, 0
        %v498 = vsel %vm481, %v470, 0
        %v501 = vsel %vm481, %v471, 0
        %v504 = vsel %vm481, %v472, 0
        %506 = vmatprep.subr.mxu0 0.0
        %507 = vmatpush1.msra.mxu0 %v445
        %508 = vmatprep.subr.mxu0 0.0
        %509 = vmatpush1.msra.mxu0 %v446
        %510 = vmatprep.subr.mxu0 0.0
        %511 = vmatpush1.msra.mxu0 0.0
        %512 = vmatprep.subr.mxu0 0.0
        %513 = vmatpush1.msra.mxu0 0.0
        %514 = vmatprep.subr.mxu0 0.0
        %515 = vmatpush1.msra.mxu0 0.0
        %516 = vmatprep.subr.mxu0 0.0
        %517 = vmatpush1.msra.mxu0 0.0
        %518 = vmatprep.subr.mxu0 0.0
        %519 = vmatpush1.msra.mxu0 0.0
        %520 = vmatprep.subr.mxu0 0.0
        %521 = vmatpush1.msra.mxu0 0.0
        %522 = vmatprep.subr.mxu0 0.0
        %523 = vmatpush1.msra.mxu0 0.0
        %524 = vmatprep.subr.mxu0 0.0
        %525 = vmatpush1.msra.mxu0 0.0
        %526 = vmatprep.subr.mxu0 0.0
        %527 = vmatpush1.msra.mxu0 0.0
        %528 = vmatprep.subr.mxu0 0.0
        %529 = vmatpush1.msra.mxu0 0.0
        %530 = vmatprep.subr.mxu0 0.0
        %531 = vmatpush1.msra.mxu0 0.0
        %532 = vmatprep.subr.mxu0 0.0
        %533 = vmatpush1.msra.mxu0 0.0
        %534 = vmatprep.subr.mxu0 0.0
        %535 = vmatpush1.msra.mxu0 0.0
        %536 = vmatprep.subr.mxu0 0.0
        %537 = vmatpush1.msra.mxu0 0.0
        %538 = vmatprep.subr.mxu0 0.0
        %539 = vmatpush1.msra.mxu0 0.0
        %540 = vmatprep.subr.mxu0 0.0
        %541 = vmatpush1.msra.mxu0 0.0
        %542 = vmatprep.subr.mxu0 0.0
        %543 = vmatpush1.msra.mxu0 0.0
        %544 = vmatprep.subr.mxu0 0.0
        %545 = vmatpush1.msra.mxu0 0.0
        %546 = vmatprep.subr.mxu0 0.0
        %547 = vmatpush1.msra.mxu0 0.0
        %548 = vmatprep.subr.mxu0 0.0
        %549 = vmatpush1.msra.mxu0 0.0
        %550 = vmatprep.subr.mxu0 0.0
        %551 = vmatpush1.msra.mxu0 0.0
        %552 = vmatprep.subr.mxu0 0.0
        %553 = vmatpush1.msra.mxu0 0.0
        %554 = vmatprep.subr.mxu0 0.0
        %555 = vmatpush1.msra.mxu0 0.0
        %556 = vmatprep.subr.mxu0 0.0
        %557 = vmatpush1.msra.mxu0 0.0
        %558 = vmatprep.subr.mxu0 0.0
        %559 = vmatpush1.msra.mxu0 0.0
        %560 = vmatprep.subr.mxu0 0.0
        %561 = vmatpush1.msra.mxu0 0.0
        %562 = vmatprep.subr.mxu0 0.0
        %563 = vmatpush1.msra.mxu0 0.0
        %564 = vmatprep.subr.mxu0 0.0
        %565 = vmatpush1.msra.mxu0 0.0
        %566 = vmatprep.subr.mxu0 0.0
        %567 = vmatpush1.msra.mxu0 0.0
        %568 = vmatprep.subr.mxu0 0.0
        %569 = vmatpush1.msra.mxu0 0.0
        %570 = vmatprep.mubr.f32.mxu0 0.0
        %571 = vmatmul.mubr.f32.gmra.mrb[0].mxu0 %v483
        %v572 = vpop.f32.mrb[0].mxu0
        %v573 = vadd.f32 0.0, %v572
        %v574 = vpop.f32.mrb[0].mxu0
        %575 = vmatprep.mubr.f32.mxu0 0.0
        %576 = vmatmul.mubr.f32.gmra.mrb[0].mxu0 %v486
        %v577 = vpop.f32.mrb[0].mxu0
        %v578 = vadd.f32 0.0, %v577
        %v579 = vpop.f32.mrb[0].mxu0
        %580 = vmatprep.mubr.f32.mxu0 0.0
        %581 = vmatmul.mubr.f32.gmra.mrb[0].mxu0 %v489
        %v582 = vpop.f32.mrb[0].mxu0
        %v583 = vadd.f32 0.0, %v582
        %v584 = vpop.f32.mrb[0].mxu0
        %585 = vmatprep.mubr.f32.mxu0 0.0
        %586 = vmatmul.mubr.f32.gmra.mrb[0].mxu0 %v492
        %v587 = vpop.f32.mrb[0].mxu0
        %v588 = vadd.f32 0.0, %v587
        %v589 = vpop.f32.mrb[0].mxu0
        %590 = vmatprep.mubr.f32.mxu0 0.0
        %591 = vmatmul.mubr.f32.gmra.mrb[0].mxu0 %v495
        %v592 = vpop.f32.mrb[0].mxu0
        %v593 = vadd.f32 0.0, %v592
        %v594 = vpop.f32.mrb[0].mxu0
        %595 = vmatprep.mubr.f32.mxu0 0.0
        %596 = vmatmul.mubr.f32.gmra.mrb[0].mxu0 %v498
        %v597 = vpop.f32.mrb[0].mxu0
        %v598 = vadd.f32 0.0, %v597
        %v599 = vpop.f32.mrb[0].mxu0
        %600 = vmatprep.mubr.f32.mxu0 0.0
        %601 = vmatmul.mubr.f32.gmra.mrb[0].mxu0 %v501
        %v602 = vpop.f32.mrb[0].mxu0
        %v603 = vadd.f32 0.0, %v602
        %v604 = vpop.f32.mrb[0].mxu0
        %605 = vmatprep.mubr.f32.mxu0 0.0
        %606 = vmatmul.mubr.f32.gmra.mrb[0].mxu0 %v504
        %v607 = vpop.f32.mrb[0].mxu0
        %v608 = vadd.f32 0.0, %v607
        %v609 = vpop.f32.mrb[0].mxu0
        %610 = vdwg.mxu0
        %611 = vxpose.xlu0.b32.start [1/16] %v439, 128
        %612 = vxpose.xlu0.b32.cont [2/16] %v440, 128
        %613 = vxpose.xlu0.b32.cont [3/16] 0.0, 128
        %614 = vxpose.xlu0.b32.cont [4/16] 0.0, 128
        %615 = vxpose.xlu0.b32.cont [5/16] 0.0, 128
        %616 = vxpose.xlu0.b32.cont [6/16] 0.0, 128
        %617 = vxpose.xlu0.b32.cont [7/16] 0.0, 128
        %618 = vxpose.xlu0.b32.cont [8/16] 0.0, 128
        %619 = vxpose.xlu0.b32.cont [9/16] 0.0, 128
        %620 = vxpose.xlu0.b32.cont [10/16] 0.0, 128
        %621 = vxpose.xlu0.b32.cont [11/16] 0.0, 128
        %622 = vxpose.xlu0.b32.cont [12/16] 0.0, 128
        %623 = vxpose.xlu0.b32.cont [13/16] 0.0, 128
        %624 = vxpose.xlu0.b32.cont [14/16] 0.0, 128
        %625 = vxpose.xlu0.b32.cont [15/16] 0.0, 128
        %626 = vxpose.xlu0.b32.end [16/16] 0.0, 128
        %v627 = vpop.trf.xlu0
        %v628 = vpop.trf.xlu0
        %v629 = vpop.trf.xlu0
        %v630 = vpop.trf.xlu0
        %v631 = vpop.trf.xlu0
        %v632 = vpop.trf.xlu0
        %v633 = vpop.trf.xlu0
        %v634 = vpop.trf.xlu0
        %v635 = vpop.trf.xlu0
        %v636 = vpop.trf.xlu0
        %v637 = vpop.trf.xlu0
        %v638 = vpop.trf.xlu0
        %v639 = vpop.trf.xlu0
        %v640 = vpop.trf.xlu0
        %v641 = vpop.trf.xlu0
        %v642 = vpop.trf.xlu0
        %v644 = vsel %vm481, %v627, 0
        %v647 = vsel %vm481, %v628, 0
        %v650 = vsel %vm481, %v629, 0
        %v653 = vsel %vm481, %v630, 0
        %v656 = vsel %vm481, %v631, 0
        %v659 = vsel %vm481, %v632, 0
        %v662 = vsel %vm481, %v633, 0
        %v665 = vsel %vm481, %v634, 0
        %667 = vmatprep.subr.mxu0 0.0
        %668 = vmatpush1.msra.mxu0 %v447
        %669 = vmatprep.subr.mxu0 0.0
        %670 = vmatpush1.msra.mxu0 %v448
        %671 = vmatprep.subr.mxu0 0.0
        %672 = vmatpush1.msra.mxu0 0.0
        %673 = vmatprep.subr.mxu0 0.0
        %674 = vmatpush1.msra.mxu0 0.0
        %675 = vmatprep.subr.mxu0 0.0
        %676 = vmatpush1.msra.mxu0 0.0
        %677 = vmatprep.subr.mxu0 0.0
        %678 = vmatpush1.msra.mxu0 0.0
        %679 = vmatprep.subr.mxu0 0.0
        %680 = vmatpush1.msra.mxu0 0.0
        %681 = vmatprep.subr.mxu0 0.0
        %682 = vmatpush1.msra.mxu0 0.0
        %683 = vmatprep.subr.mxu0 0.0
        %684 = vmatpush1.msra.mxu0 0.0
        %685 = vmatprep.subr.mxu0 0.0
        %686 = vmatpush1.msra.mxu0 0.0
        %687 = vmatprep.subr.mxu0 0.0
        %688 = vmatpush1.msra.mxu0 0.0
        %689 = vmatprep.subr.mxu0 0.0
        %690 = vmatpush1.msra.mxu0 0.0
        %691 = vmatprep.subr.mxu0 0.0
        %692 = vmatpush1.msra.mxu0 0.0
        %693 = vmatprep.subr.mxu0 0.0
        %694 = vmatpush1.msra.mxu0 0.0
        %695 = vmatprep.subr.mxu0 0.0
        %696 = vmatpush1.msra.mxu0 0.0
        %697 = vmatprep.subr.mxu0 0.0
        %698 = vmatpush1.msra.mxu0 0.0
        %699 = vmatprep.subr.mxu0 0.0
        %700 = vmatpush1.msra.mxu0 0.0
        %701 = vmatprep.subr.mxu0 0.0
        %702 = vmatpush1.msra.mxu0 0.0
        %703 = vmatprep.subr.mxu0 0.0
        %704 = vmatpush1.msra.mxu0 0.0
        %705 = vmatprep.subr.mxu0 0.0
        %706 = vmatpush1.msra.mxu0 0.0
        %707 = vmatprep.subr.mxu0 0.0
        %708 = vmatpush1.msra.mxu0 0.0
        %709 = vmatprep.subr.mxu0 0.0
        %710 = vmatpush1.msra.mxu0 0.0
        %711 = vmatprep.subr.mxu0 0.0
        %712 = vmatpush1.msra.mxu0 0.0
        %713 = vmatprep.subr.mxu0 0.0
        %714 = vmatpush1.msra.mxu0 0.0
        %715 = vmatprep.subr.mxu0 0.0
        %716 = vmatpush1.msra.mxu0 0.0
        %717 = vmatprep.subr.mxu0 0.0
        %718 = vmatpush1.msra.mxu0 0.0
        %719 = vmatprep.subr.mxu0 0.0
        %720 = vmatpush1.msra.mxu0 0.0
        %721 = vmatprep.subr.mxu0 0.0
        %722 = vmatpush1.msra.mxu0 0.0
        %723 = vmatprep.subr.mxu0 0.0
        %724 = vmatpush1.msra.mxu0 0.0
        %725 = vmatprep.subr.mxu0 0.0
        %726 = vmatpush1.msra.mxu0 0.0
        %727 = vmatprep.subr.mxu0 0.0
        %728 = vmatpush1.msra.mxu0 0.0
        %729 = vmatprep.subr.mxu0 0.0
        %730 = vmatpush1.msra.mxu0 0.0
        %731 = vmatprep.mubr.f32.mxu0 0.0
        %732 = vmatmul.mubr.f32.gmra.mrb[0].mxu0 %v644
        %v733 = vpop.f32.mrb[0].mxu0
        %v734 = vadd.f32 0.0, %v733
        %v735 = vpop.f32.mrb[0].mxu0
        %736 = vmatprep.mubr.f32.mxu0 0.0
        %737 = vmatmul.mubr.f32.gmra.mrb[0].mxu0 %v647
        %v738 = vpop.f32.mrb[0].mxu0
        %v739 = vadd.f32 0.0, %v738
        %v740 = vpop.f32.mrb[0].mxu0
        %741 = vmatprep.mubr.f32.mxu0 0.0
        %742 = vmatmul.mubr.f32.gmra.mrb[0].mxu0 %v650
        %v743 = vpop.f32.mrb[0].mxu0
        %v744 = vadd.f32 0.0, %v743
        %v745 = vpop.f32.mrb[0].mxu0
        %746 = vmatprep.mubr.f32.mxu0 0.0
        %747 = vmatmul.mubr.f32.gmra.mrb[0].mxu0 %v653
        %v748 = vpop.f32.mrb[0].mxu0
        %v749 = vadd.f32 0.0, %v748
        %v750 = vpop.f32.mrb[0].mxu0
        %751 = vmatprep.mubr.f32.mxu0 0.0
        %752 = vmatmul.mubr.f32.gmra.mrb[0].mxu0 %v656
        %v753 = vpop.f32.mrb[0].mxu0
        %v754 = vadd.f32 0.0, %v753
        %v755 = vpop.f32.mrb[0].mxu0
        %756 = vmatprep.mubr.f32.mxu0 0.0
        %757 = vmatmul.mubr.f32.gmra.mrb[0].mxu0 %v659
        %v758 = vpop.f32.mrb[0].mxu0
        %v759 = vadd.f32 0.0, %v758
        %v760 = vpop.f32.mrb[0].mxu0
        %761 = vmatprep.mubr.f32.mxu0 0.0
        %762 = vmatmul.mubr.f32.gmra.mrb[0].mxu0 %v662
        %v763 = vpop.f32.mrb[0].mxu0
        %v764 = vadd.f32 0.0, %v763
        %v765 = vpop.f32.mrb[0].mxu0
        %766 = vmatprep.mubr.f32.mxu0 0.0
        %767 = vmatmul.mubr.f32.gmra.mrb[0].mxu0 %v665
        %v768 = vpop.f32.mrb[0].mxu0
        %v769 = vadd.f32 0.0, %v768
        %v770 = vpop.f32.mrb[0].mxu0
        %771 = vdwg.mxu0
        %v772 = vld [vmem:[#allocation2] sm:$0xff]
        %v773 = vld [vmem:[#allocation2 + $0x8] sm:$0xff]
        %v774 = vld [vmem:[#allocation2 + $0x10] sm:$0xff]
        %v775 = vld [vmem:[#allocation2 + $0x18] sm:$0xff]
        %v776 = vld [vmem:[#allocation2 + $0x20] sm:$0xff]
        %v777 = vld [vmem:[#allocation2 + $0x28] sm:$0xff]
        %v778 = vld [vmem:[#allocation2 + $0x30] sm:$0xff]
        %v779 = vld [vmem:[#allocation2 + $0x38] sm:$0xff]
        %v780 = vld [vmem:[#allocation2 + $0x40] sm:$0xff]
        %v781 = vld [vmem:[#allocation2 + $0x48] sm:$0xff]
        %v782 = vld [vmem:[#allocation2 + $0x50] sm:$0xff]
        %v783 = vld [vmem:[#allocation2 + $0x58] sm:$0xff]
        %v784 = vld [vmem:[#allocation2 + $0x60] sm:$0xff]
        %v785 = vld [vmem:[#allocation2 + $0x68] sm:$0xff]
        %v786 = vld [vmem:[#allocation2 + $0x70] sm:$0xff]
        %v787 = vld [vmem:[#allocation2 + $0x78] sm:$0xff]
        %v788 = vadd.f32 %v772, %v573
        %v789 = vadd.f32 %v773, %v578
        %v790 = vadd.f32 %v774, %v583
        %v791 = vadd.f32 %v775, %v588
        %v792 = vadd.f32 %v776, %v593
        %v793 = vadd.f32 %v777, %v598
        %v794 = vadd.f32 %v778, %v603
        %v795 = vadd.f32 %v779, %v608
        %v796 = vadd.f32 %v780, %v734
        %v797 = vadd.f32 %v781, %v739
        %v798 = vadd.f32 %v782, %v744
        %v799 = vadd.f32 %v783, %v749
        %v800 = vadd.f32 %v784, %v754
        %v801 = vadd.f32 %v785, %v759
        %v802 = vadd.f32 %v786, %v764
        %v803 = vadd.f32 %v787, %v769
        %vm804 = vcmask 269312
        %805 = vst.msk [vmem:[#allocation2] sm:$0xff] %vm804, %v788
        %806 = vst.msk [vmem:[#allocation2 + $0x8] sm:$0xff] %vm804, %v789
        %807 = vst.msk [vmem:[#allocation2 + $0x10] sm:$0xff] %vm804, %v790
        %808 = vst.msk [vmem:[#allocation2 + $0x18] sm:$0xff] %vm804, %v791
        %809 = vst.msk [vmem:[#allocation2 + $0x20] sm:$0xff] %vm804, %v792
        %810 = vst.msk [vmem:[#allocation2 + $0x28] sm:$0xff] %vm804, %v793
        %811 = vst.msk [vmem:[#allocation2 + $0x30] sm:$0xff] %vm804, %v794
        %812 = vst.msk [vmem:[#allocation2 + $0x38] sm:$0xff] %vm804, %v795
        %813 = vst.msk [vmem:[#allocation2 + $0x40] sm:$0xff] %vm804, %v796
        %814 = vst.msk [vmem:[#allocation2 + $0x48] sm:$0xff] %vm804, %v797
        %815 = vst.msk [vmem:[#allocation2 + $0x50] sm:$0xff] %vm804, %v798
        %816 = vst.msk [vmem:[#allocation2 + $0x58] sm:$0xff] %vm804, %v799
        %817 = vst.msk [vmem:[#allocation2 + $0x60] sm:$0xff] %vm804, %v800
        %818 = vst.msk [vmem:[#allocation2 + $0x68] sm:$0xff] %vm804, %v801
        %819 = vst.msk [vmem:[#allocation2 + $0x70] sm:$0xff] %vm804, %v802
        %820 = vst.msk [vmem:[#allocation2 + $0x78] sm:$0xff] %vm804, %v803
        // Predicated region
        $region49: #{tpu_custom_call.1} parent=31 // pred_check
          %p821 = pneg %p274
        $region50: #{tpu_custom_call.1} parent=31 // pred_check_branch
          %823 = sbr.rel (%p821) target = $region52
        $region51: #{tpu_custom_call.1} parent=31 // pred_region
          %v824 = vld [vmem:[#allocation2] sm:$0xff]
          %v825 = vld [vmem:[#allocation2 + $0x8] sm:$0xff]
          %v826 = vld [vmem:[#allocation2 + $0x10] sm:$0xff]
          %v827 = vld [vmem:[#allocation2 + $0x18] sm:$0xff]
          %v828 = vld [vmem:[#allocation2 + $0x20] sm:$0xff]
          %v829 = vld [vmem:[#allocation2 + $0x28] sm:$0xff]
          %v830 = vld [vmem:[#allocation2 + $0x30] sm:$0xff]
          %v831 = vld [vmem:[#allocation2 + $0x38] sm:$0xff]
          %v832 = vld [vmem:[#allocation2 + $0x40] sm:$0xff]
          %v833 = vld [vmem:[#allocation2 + $0x48] sm:$0xff]
          %v834 = vld [vmem:[#allocation2 + $0x50] sm:$0xff]
          %v835 = vld [vmem:[#allocation2 + $0x58] sm:$0xff]
          %v836 = vld [vmem:[#allocation2 + $0x60] sm:$0xff]
          %v837 = vld [vmem:[#allocation2 + $0x68] sm:$0xff]
          %v838 = vld [vmem:[#allocation2 + $0x70] sm:$0xff]
          %v839 = vld [vmem:[#allocation2 + $0x78] sm:$0xff]
          %840 = vst.msk [vmem:[%s272] sm:$0xff] %vm804, %v824
          %841 = vst.msk [vmem:[%s272 + $0x8] sm:$0xff] %vm804, %v825
          %842 = vst.msk [vmem:[%s272 + $0x10] sm:$0xff] %vm804, %v826
          %843 = vst.msk [vmem:[%s272 + $0x18] sm:$0xff] %vm804, %v827
          %844 = vst.msk [vmem:[%s272 + $0x20] sm:$0xff] %vm804, %v828
          %845 = vst.msk [vmem:[%s272 + $0x28] sm:$0xff] %vm804, %v829
          %846 = vst.msk [vmem:[%s272 + $0x30] sm:$0xff] %vm804, %v830
          %847 = vst.msk [vmem:[%s272 + $0x38] sm:$0xff] %vm804, %v831
          %848 = vst.msk [vmem:[%s272 + $0x40] sm:$0xff] %vm804, %v832
          %849 = vst.msk [vmem:[%s272 + $0x48] sm:$0xff] %vm804, %v833
          %850 = vst.msk [vmem:[%s272 + $0x50] sm:$0xff] %vm804, %v834
          %851 = vst.msk [vmem:[%s272 + $0x58] sm:$0xff] %vm804, %v835
          %852 = vst.msk [vmem:[%s272 + $0x60] sm:$0xff] %vm804, %v836
          %853 = vst.msk [vmem:[%s272 + $0x68] sm:$0xff] %vm804, %v837
          %854 = vst.msk [vmem:[%s272 + $0x70] sm:$0xff] %vm804, %v838
          %855 = vst.msk [vmem:[%s272 + $0x78] sm:$0xff] %vm804, %v839
        $region52: #{tpu_custom_call.1} parent=31 // pred_fallthru
          _
        %s856 = smul.u32 2, %s24
        %p857 = scmp.lt.s32.totalorder %s856, 3
        %s858 = scalar_select %p857, %s856, 3
        %s859 = smul.addr %s858, 8
        %s860 = smul.addr %s859, 8
        %s861 = scalar_lea.vmem %s3, %s860
        // Predicated region
        $region53: #{tpu_custom_call.1} parent=31 // pred_check
          %p862 = pneg %p127
        $region54: #{tpu_custom_call.1} parent=31 // pred_check_branch
          %864 = sbr.rel (%p862) target = $region56
        $region55: #{tpu_custom_call.1} parent=31 // pred_region
          %s865 = smul.u32 2, %s24
        $region56: #{tpu_custom_call.1} parent=31 // pred_fallthru
          _
      $region32: #{tpu_custom_call.1} parent=5 // pred_fallthru
        _
      %p866 = scmp.le.s32.totalorder 2, %s15
      // Predicated region
      $region57: #{tpu_custom_call.1} parent=5 // pred_check
        %p867 = pneg %p866
      $region58: #{tpu_custom_call.1} parent=5 // pred_check_branch
        %869 = sbr.rel (%p867) target = $region60
      $region59: #{tpu_custom_call.1} parent=5 // pred_region
        %s870 = ssub.s32 %s15, 2
        // Predicated region
        $region61: #{tpu_custom_call.1} parent=59 // pred_check
          %p871 = pneg %p133
        $region62: #{tpu_custom_call.1} parent=59 // pred_check_branch
          %873 = sbr.rel (%p871) target = $region64
        $region63: #{tpu_custom_call.1} parent=59 // pred_region
          %s874 = smul.u32 2, %s26
          %p875 = scmp.lt.s32.totalorder %s874, 3
          %s876 = scalar_select %p875, %s874, 3
          %s877 = smul.addr %s876, 8
          %s878 = smul.addr %s877, 8
          %s879 = scalar_lea.vmem %s3, %s878
        $region64: #{tpu_custom_call.1} parent=59 // pred_fallthru
          _
      $region60: #{tpu_custom_call.1} parent=5 // pred_fallthru
        _
    $region6: #{tpu_custom_call.1} parent=1 // loop_footer
      %s19 = sadd.s32 1, %s15
    $region7: #{tpu_custom_call.1} parent=1 // loop_footer_branch
      %14 = sbr.rel target = $region3
    $region8: #{tpu_custom_call.1} parent=1 // loop_exit
      _
    %880 = vsyncpa [#allocation4], 1
    %s881 = scalar_lea.sflag [#allocation4], 1
    %882 = vsyncpa %s881, 1
    %883 = vsyncpa [#allocation6], 1
    %s884 = scalar_lea.sflag [#allocation6], 1
    %885 = vsyncpa %s884, 1

</llo_original>
